<compile_context>
chip_gen: v5e
topology: v5e:2x2
jax: 0.10.0
libtpu: 0.0.40
codegen_flags: <defaults>
</compile_context>

<pallas_src>
import jax
import jax.numpy as jnp
from jax.experimental import pallas as pl
from jax.experimental.pallas import tpu as pltpu


def _round_up(n, m):
    return ((n + m - 1) // m) * m


def _cdiv(a, b):
    return -(-a // b)


# ---------------------------------------------------------------------------
# Kernels
# ---------------------------------------------------------------------------

def _sigmoid(z):
    # EUP-friendly sigmoid: exp and the approximate reciprocal both use the
    # EUP slot, keeping the VALU free in the last-layer epilogue.
    return pl.reciprocal(1.0 + jnp.exp(-z), approx=True)


def ae_kernel_fm(x_ref,
                 w1, b1, w2, b2, w3, b3, w4, b4, w5, b5, w6, b6,
                 o_ref):
    """Feature-major: activations are (features, batch_tile); batch on lanes."""
    def dense(h, w_ref, b_ref):
        # (out, in) @ (in, bt) -> (out, bt); f32 accumulation on the MXU.
        z = jnp.dot(w_ref[...], h, preferred_element_type=jnp.float32)
        return z + b_ref[...]                    # bias (out, 1) broadcasts over lanes

    def dense_relu(h, w_ref, b_ref):
        return jnp.maximum(dense(h, w_ref, b_ref), 0.0).astype(jnp.bfloat16)

    h = x_ref[...]                               # bf16 (D, bt)
    h = dense_relu(h, w1, b1)                    # D  -> 64
    h = dense_relu(h, w2, b2)                    # 64 -> 32
    h = dense_relu(h, w3, b3)                    # 32 -> 16
    h = dense_relu(h, w4, b4)                    # 16 -> 32
    h = dense_relu(h, w5, b5)                    # 32 -> 64
    z = dense(h, w6, b6)                         # 64 -> D   (f32)
    o_ref[...] = _sigmoid(z).astype(o_ref.dtype)


def ae_kernel_bm(x_ref,
                 w1, b1, w2, b2, w3, b3, w4, b4, w5, b5, w6, b6,
                 o_ref):
    """Batch-major: activations are (batch_tile, features); D (mult. of 128) on lanes."""
    def dense(h, w_ref, b_ref):
        # (bt, in) @ (in, out) -> (bt, out); f32 accumulation on the MXU.
        z = jnp.dot(h, w_ref[...], preferred_element_type=jnp.float32)
        return z + b_ref[...]                    # bias (1, out) broadcasts over sublanes

    def dense_relu(h, w_ref, b_ref):
        return jnp.maximum(dense(h, w_ref, b_ref), 0.0).astype(jnp.bfloat16)

    h = x_ref[...]                               # bf16 (bt, D)
    h = dense_relu(h, w1, b1)
    h = dense_relu(h, w2, b2)
    h = dense_relu(h, w3, b3)
    h = dense_relu(h, w4, b4)
    h = dense_relu(h, w5, b5)
    z = dense(h, w6, b6)
    o_ref[...] = _sigmoid(z).astype(o_ref.dtype)


# ---------------------------------------------------------------------------
# Wrapper
# ---------------------------------------------------------------------------

def _vmem_limits():
    """Generation-aware VMEM limit and streaming-buffer budget (bytes)."""
    try:
        phys = int(pltpu.get_tpu_info().vmem_capacity_bytes)
    except Exception:
        phys = 64 << 20                           # conservative: v7x per-TC VMEM
    vmem_limit = min(96 << 20, (phys * 3) // 4)   # 48 MiB on v7x, 96 MiB on v5e/v6e
    stream_budget = vmem_limit // 2               # half for double-buffered in/out streams
    return vmem_limit, stream_budget


def _choose_tile(B, D, stream_budget):
    """Batch tile from the VMEM budget; >=2 grid steps when the batch allows it."""
    b_align = _round_up(B, 128)
    blocks = b_align // 128
    # Streaming VMEM per batch column: bf16 in + bf16 out, each double-buffered ~ 8*D bytes.
    budget_blocks = max(1, stream_budget // (8 * D * 128))
    budget_blocks = min(budget_blocks, 64)        # cap tile at 8192 columns
    min_steps = 2 if blocks >= 2 else 1           # >=2 steps: v7x megacore + DMA overlap
    n_steps = max(min_steps, _cdiv(blocks, budget_blocks))
    bt = _cdiv(blocks, n_steps) * 128
    n_steps = _cdiv(b_align, bt)
    return bt, n_steps * bt


@jax.jit
def deep_autoencoder_forward(x, params):
    """x: (B, D) float32; params: list of (W, b) with W (out, in), b (out,).

    Matches PyTorch semantics: y = sigmoid(L6(relu(L5(...relu(L1(x))...)))).
    (MXU inputs are quantized to bf16; accumulation is f32.)
    """
    B, D = x.shape
    vmem_limit, stream_budget = _vmem_limits()
    bt, Bp = _choose_tile(B, D, stream_budget)
    grid = (Bp // bt,)
    batch_major = (D % 128 == 0)

    flat = []
    in_specs = []
    if batch_major:
        # Transpose-free path: last dim D is already lane-dense, so keep the
        # external (batch, feature) layout end to end (no wrapper HBM passes).
        xin = x.astype(jnp.bfloat16)
        if Bp != B:
            xin = jnp.pad(xin, ((0, Bp - B), (0, 0)))
        in_specs.append(pl.BlockSpec((bt, D), lambda i: (i, 0)))
        for (w, b) in params:
            wb = jnp.transpose(w).astype(jnp.bfloat16)       # (in, out)
            bb = b.reshape(1, -1).astype(jnp.float32)        # (1, out)
            flat.extend([wb, bb])
            in_specs.append(pl.BlockSpec(wb.shape, lambda i: (0, 0)))
            in_specs.append(pl.BlockSpec(bb.shape, lambda i: (0, 0)))
        out_spec = pl.BlockSpec((bt, D), lambda i: (i, 0))
        out_shape = jax.ShapeDtypeStruct((Bp, D), jnp.bfloat16)
        kernel = ae_kernel_bm
    else:
        # Feature-major path: batch on the 128-lane axis so stores stay
        # lane-dense when D < 128; one transpose each way in the wrapper.
        xin = jnp.transpose(x).astype(jnp.bfloat16)          # (D, B)
        if Bp != B:
            xin = jnp.pad(xin, ((0, 0), (0, Bp - B)))
        in_specs.append(pl.BlockSpec((D, bt), lambda i: (0, i)))
        for (w, b) in params:
            wb = w.astype(jnp.bfloat16)                      # (out, in)
            bb = b.reshape(-1, 1).astype(jnp.float32)        # (out, 1)
            flat.extend([wb, bb])
            in_specs.append(pl.BlockSpec(wb.shape, lambda i: (0, 0)))
            in_specs.append(pl.BlockSpec(bb.shape, lambda i: (0, 0)))
        out_spec = pl.BlockSpec((D, bt), lambda i: (0, i))
        out_shape = jax.ShapeDtypeStruct((D, Bp), jnp.bfloat16)
        kernel = ae_kernel_fm

    out = pl.pallas_call(
        kernel,
        out_shape=out_shape,
        grid_spec=pltpu.PrefetchScalarGridSpec(
            num_scalar_prefetch=0,
            grid=grid,
            in_specs=in_specs,
            out_specs=out_spec,
        ),
        compiler_params=pltpu.CompilerParams(
            dimension_semantics=("parallel",),
            vmem_limit_bytes=vmem_limit,
        ),
    )(xin, *flat)

    # Restore the f32 (B, D) contract; pad rows/cols are sliced off.
    if batch_major:
        return out[:B, :].astype(jnp.float32)
    return jnp.transpose(out[:, :B]).astype(jnp.float32)


# ---------------------------------------------------------------------------
# Params / reference / test
# ---------------------------------------------------------------------------

def init_params(key, input_size):
    """PyTorch-Linear-style init; W is (out_features, in_features), b is (out,)."""
    dims = [input_size, 64, 32, 16, 32, 64, input_size]
    params = []
    for i in range(len(dims) - 1):
        fan_in, fan_out = dims[i], dims[i + 1]
        key, kw, kb = jax.random.split(key, 3)
        bound = 1.0 / jnp.sqrt(fan_in)
        w = jax.random.uniform(kw, (fan_out, fan_in), jnp.float32, -bound, bound)
        b = jax.random.uniform(kb, (fan_out,), jnp.float32, -bound, bound)
        params.append((w, b))
    return params


def reference_forward(x, params):
    """Pure-JAX reference mirroring the kernel's bf16-matmul / f32-accumulate path."""
    h = x.astype(jnp.bfloat16)
    n = len(params)
    for idx, (w, b) in enumerate(params):
        z = jnp.dot(h, jnp.transpose(w).astype(jnp.bfloat16),
                    preferred_element_type=jnp.float32) + b[None, :]
        if idx < n - 1:
            h = jnp.maximum(z, 0.0).astype(jnp.bfloat16)
        else:
            h = jax.nn.sigmoid(z)
    return h


if __name__ == "__main__":
    key = jax.random.PRNGKey(0)
    k1, k2, k3, k4 = jax.random.split(key, 4)

    # Case 1: small D (feature-major path), batch not a multiple of the tile.
    d1, n1 = 32, 16
    x1 = jax.random.uniform(k1, (n1, d1), jnp.float32)
    p1 = init_params(k2, d1)
    y1 = jax.block_until_ready(deep_autoencoder_forward(x1, p1))
    r1 = reference_forward(x1, p1)
    assert y1.shape == (n1, d1) and y1.dtype == jnp.float32
    assert bool(jnp.all(jnp.isfinite(y1)))
    assert jnp.allclose(y1, r1, atol=1e-2, rtol=1e-2), "feature-major mismatch"

    # Case 2: D multiple of 128 (transpose-free batch-major path), multi-step grid.
    d2, n2 = 128, 260
    x2 = jax.random.uniform(k3, (n2, d2), jnp.float32)
    p2 = init_params(k4, d2)
    y2 = jax.block_until_ready(deep_autoencoder_forward(x2, p2))
    r2 = reference_forward(x2, p2)
    assert y2.shape == (n2, d2) and y2.dtype == jnp.float32
    assert bool(jnp.all(jnp.isfinite(y2)))
    assert jnp.allclose(y2, r2, atol=1e-2, rtol=1e-2), "batch-major mismatch"

    print("KERNEL_OK")
</pallas_src>

<mosaic_0001>
module attributes {stable_mosaic.version = 11 : i64} {
  func.func @ae_kernel_fm(%arg0: i32, %arg1: memref<32x128xbf16, #tpu.memory_space<vmem>>, %arg2: memref<64x32xbf16, #tpu.memory_space<vmem>>, %arg3: memref<64x1xf32, #tpu.memory_space<vmem>>, %arg4: memref<32x64xbf16, #tpu.memory_space<vmem>>, %arg5: memref<32x1xf32, #tpu.memory_space<vmem>>, %arg6: memref<16x32xbf16, #tpu.memory_space<vmem>>, %arg7: memref<16x1xf32, #tpu.memory_space<vmem>>, %arg8: memref<32x16xbf16, #tpu.memory_space<vmem>>, %arg9: memref<32x1xf32, #tpu.memory_space<vmem>>, %arg10: memref<64x32xbf16, #tpu.memory_space<vmem>>, %arg11: memref<64x1xf32, #tpu.memory_space<vmem>>, %arg12: memref<32x64xbf16, #tpu.memory_space<vmem>>, %arg13: memref<32x1xf32, #tpu.memory_space<vmem>>, %arg14: memref<32x128xbf16, #tpu.memory_space<vmem>>) attributes {dimension_semantics = [#tpu.dimension_semantics<parallel>], iteration_bounds = array<i64: 1>, scalar_prefetch = 0 : i64, scratch_operands = 0 : i64, tpu.core_type = #tpu.core_type<tc>, window_params = [{transform_indices = @transform_0, window_bounds = array<i64: 32, 128>}, {pipeline_mode = #tpu.pipeline_mode<synchronous>, transform_indices = @transform_1, window_bounds = array<i64: 64, 32>}, {pipeline_mode = #tpu.pipeline_mode<synchronous>, transform_indices = @transform_2, window_bounds = array<i64: 64, 1>}, {pipeline_mode = #tpu.pipeline_mode<synchronous>, transform_indices = @transform_3, window_bounds = array<i64: 32, 64>}, {pipeline_mode = #tpu.pipeline_mode<synchronous>, transform_indices = @transform_4, window_bounds = array<i64: 32, 1>}, {pipeline_mode = #tpu.pipeline_mode<synchronous>, transform_indices = @transform_5, window_bounds = array<i64: 16, 32>}, {pipeline_mode = #tpu.pipeline_mode<synchronous>, transform_indices = @transform_6, window_bounds = array<i64: 16, 1>}, {pipeline_mode = #tpu.pipeline_mode<synchronous>, transform_indices = @transform_7, window_bounds = array<i64: 32, 16>}, {pipeline_mode = #tpu.pipeline_mode<synchronous>, transform_indices = @transform_8, window_bounds = array<i64: 32, 1>}, {pipeline_mode = #tpu.pipeline_mode<synchronous>, transform_indices = @transform_9, window_bounds = array<i64: 64, 32>}, {pipeline_mode = #tpu.pipeline_mode<synchronous>, transform_indices = @transform_10, window_bounds = array<i64: 64, 1>}, {pipeline_mode = #tpu.pipeline_mode<synchronous>, transform_indices = @transform_11, window_bounds = array<i64: 32, 64>}, {pipeline_mode = #tpu.pipeline_mode<synchronous>, transform_indices = @transform_12, window_bounds = array<i64: 32, 1>}, {transform_indices = @transform_13, window_bounds = array<i64: 32, 128>}]} {
    %c0 = arith.constant 0 : index
    %c0_0 = arith.constant 0 : index
    %0 = vector.load %arg1[%c0, %c0_0] : memref<32x128xbf16, #tpu.memory_space<vmem>>, vector<32x128xbf16>
    %c0_1 = arith.constant 0 : index
    %c0_2 = arith.constant 0 : index
    %1 = vector.load %arg2[%c0_1, %c0_2] : memref<64x32xbf16, #tpu.memory_space<vmem>>, vector<64x32xbf16>
    %cst = arith.constant dense<0.000000e+00> : vector<64x128xf32>
    %2 = tpu.matmul %1, %0, %cst {dimension_numbers = #tpu.dot_dimension_numbers<[1], [0], [0], [1], [0, 0, 1, 1], [], []>} : vector<64x32xbf16>, vector<32x128xbf16>, vector<64x128xf32> -> vector<64x128xf32>
    %c0_3 = arith.constant 0 : index
    %c0_4 = arith.constant 0 : index
    %3 = vector.load %arg3[%c0_3, %c0_4] : memref<64x1xf32, #tpu.memory_space<vmem>>, vector<64x1xf32>
    %4 = vector.broadcast %3 : vector<64x1xf32> to vector<64x128xf32>
    %5 = arith.addf %2, %4 : vector<64x128xf32>
    %cst_5 = arith.constant 0.000000e+00 : f32
    %6 = vector.broadcast %cst_5 : f32 to vector<64x128xf32>
    %7 = arith.maximumf %5, %6 : vector<64x128xf32>
    %8 = arith.truncf %7 : vector<64x128xf32> to vector<64x128xbf16>
    %c0_6 = arith.constant 0 : index
    %c0_7 = arith.constant 0 : index
    %9 = vector.load %arg4[%c0_6, %c0_7] : memref<32x64xbf16, #tpu.memory_space<vmem>>, vector<32x64xbf16>
    %cst_8 = arith.constant dense<0.000000e+00> : vector<32x128xf32>
    %10 = tpu.matmul %9, %8, %cst_8 {dimension_numbers = #tpu.dot_dimension_numbers<[1], [0], [0], [1], [0, 0, 1, 1], [], []>} : vector<32x64xbf16>, vector<64x128xbf16>, vector<32x128xf32> -> vector<32x128xf32>
    %c0_9 = arith.constant 0 : index
    %c0_10 = arith.constant 0 : index
    %11 = vector.load %arg5[%c0_9, %c0_10] : memref<32x1xf32, #tpu.memory_space<vmem>>, vector<32x1xf32>
    %12 = vector.broadcast %11 : vector<32x1xf32> to vector<32x128xf32>
    %13 = arith.addf %10, %12 : vector<32x128xf32>
    %cst_11 = arith.constant 0.000000e+00 : f32
    %14 = vector.broadcast %cst_11 : f32 to vector<32x128xf32>
    %15 = arith.maximumf %13, %14 : vector<32x128xf32>
    %16 = arith.truncf %15 : vector<32x128xf32> to vector<32x128xbf16>
    %c0_12 = arith.constant 0 : index
    %c0_13 = arith.constant 0 : index
    %17 = vector.load %arg6[%c0_12, %c0_13] : memref<16x32xbf16, #tpu.memory_space<vmem>>, vector<16x32xbf16>
    %cst_14 = arith.constant dense<0.000000e+00> : vector<16x128xf32>
    %18 = tpu.matmul %17, %16, %cst_14 {dimension_numbers = #tpu.dot_dimension_numbers<[1], [0], [0], [1], [0, 0, 1, 1], [], []>} : vector<16x32xbf16>, vector<32x128xbf16>, vector<16x128xf32> -> vector<16x128xf32>
    %c0_15 = arith.constant 0 : index
    %c0_16 = arith.constant 0 : index
    %19 = vector.load %arg7[%c0_15, %c0_16] : memref<16x1xf32, #tpu.memory_space<vmem>>, vector<16x1xf32>
    %20 = vector.broadcast %19 : vector<16x1xf32> to vector<16x128xf32>
    %21 = arith.addf %18, %20 : vector<16x128xf32>
    %cst_17 = arith.constant 0.000000e+00 : f32
    %22 = vector.broadcast %cst_17 : f32 to vector<16x128xf32>
    %23 = arith.maximumf %21, %22 : vector<16x128xf32>
    %24 = arith.truncf %23 : vector<16x128xf32> to vector<16x128xbf16>
    %c0_18 = arith.constant 0 : index
    %c0_19 = arith.constant 0 : index
    %25 = vector.load %arg8[%c0_18, %c0_19] : memref<32x16xbf16, #tpu.memory_space<vmem>>, vector<32x16xbf16>
    %cst_20 = arith.constant dense<0.000000e+00> : vector<32x128xf32>
    %26 = tpu.matmul %25, %24, %cst_20 {dimension_numbers = #tpu.dot_dimension_numbers<[1], [0], [0], [1], [0, 0, 1, 1], [], []>} : vector<32x16xbf16>, vector<16x128xbf16>, vector<32x128xf32> -> vector<32x128xf32>
    %c0_21 = arith.constant 0 : index
    %c0_22 = arith.constant 0 : index
    %27 = vector.load %arg9[%c0_21, %c0_22] : memref<32x1xf32, #tpu.memory_space<vmem>>, vector<32x1xf32>
    %28 = vector.broadcast %27 : vector<32x1xf32> to vector<32x128xf32>
    %29 = arith.addf %26, %28 : vector<32x128xf32>
    %cst_23 = arith.constant 0.000000e+00 : f32
    %30 = vector.broadcast %cst_23 : f32 to vector<32x128xf32>
    %31 = arith.maximumf %29, %30 : vector<32x128xf32>
    %32 = arith.truncf %31 : vector<32x128xf32> to vector<32x128xbf16>
    %c0_24 = arith.constant 0 : index
    %c0_25 = arith.constant 0 : index
    %33 = vector.load %arg10[%c0_24, %c0_25] : memref<64x32xbf16, #tpu.memory_space<vmem>>, vector<64x32xbf16>
    %cst_26 = arith.constant dense<0.000000e+00> : vector<64x128xf32>
    %34 = tpu.matmul %33, %32, %cst_26 {dimension_numbers = #tpu.dot_dimension_numbers<[1], [0], [0], [1], [0, 0, 1, 1], [], []>} : vector<64x32xbf16>, vector<32x128xbf16>, vector<64x128xf32> -> vector<64x128xf32>
    %c0_27 = arith.constant 0 : index
    %c0_28 = arith.constant 0 : index
    %35 = vector.load %arg11[%c0_27, %c0_28] : memref<64x1xf32, #tpu.memory_space<vmem>>, vector<64x1xf32>
    %36 = vector.broadcast %35 : vector<64x1xf32> to vector<64x128xf32>
    %37 = arith.addf %34, %36 : vector<64x128xf32>
    %cst_29 = arith.constant 0.000000e+00 : f32
    %38 = vector.broadcast %cst_29 : f32 to vector<64x128xf32>
    %39 = arith.maximumf %37, %38 : vector<64x128xf32>
    %40 = arith.truncf %39 : vector<64x128xf32> to vector<64x128xbf16>
    %c0_30 = arith.constant 0 : index
    %c0_31 = arith.constant 0 : index
    %41 = vector.load %arg12[%c0_30, %c0_31] : memref<32x64xbf16, #tpu.memory_space<vmem>>, vector<32x64xbf16>
    %cst_32 = arith.constant dense<0.000000e+00> : vector<32x128xf32>
    %42 = tpu.matmul %41, %40, %cst_32 {dimension_numbers = #tpu.dot_dimension_numbers<[1], [0], [0], [1], [0, 0, 1, 1], [], []>} : vector<32x64xbf16>, vector<64x128xbf16>, vector<32x128xf32> -> vector<32x128xf32>
    %c0_33 = arith.constant 0 : index
    %c0_34 = arith.constant 0 : index
    %43 = vector.load %arg13[%c0_33, %c0_34] : memref<32x1xf32, #tpu.memory_space<vmem>>, vector<32x1xf32>
    %44 = vector.broadcast %43 : vector<32x1xf32> to vector<32x128xf32>
    %45 = arith.addf %42, %44 : vector<32x128xf32>
    %cst_35 = arith.constant 0.000000e+00 : f32
    %46 = vector.broadcast %cst_35 : f32 to vector<32x128xf32>
    %47 = arith.subf %46, %45 : vector<32x128xf32>
    %48 = math.exp %47 : vector<32x128xf32>
    %cst_36 = arith.constant 1.000000e+00 : f32
    %49 = vector.broadcast %cst_36 : f32 to vector<32x128xf32>
    %50 = arith.addf %49, %48 : vector<32x128xf32>
    %51 = tpu.reciprocal %50 {approx = true} : vector<32x128xf32> -> vector<32x128xf32>
    %52 = arith.truncf %51 : vector<32x128xf32> to vector<32x128xbf16>
    %c0_37 = arith.constant 0 : index
    %c0_38 = arith.constant 0 : index
    %53 = vector.load %arg14[%c0_37, %c0_38] : memref<32x128xbf16, #tpu.memory_space<vmem>>, vector<32x128xbf16>
    tpu.vector_store %arg14[%c0_37, %c0_38], %52 {strides = array<i32>} : memref<32x128xbf16, #tpu.memory_space<vmem>>, vector<32x128xbf16>,
    return
  }
  func.func @transform_0(%arg0: i32) -> (i32, i32) {
    %c0_i32 = arith.constant 0 : i32
    %c0_i32_0 = arith.constant 0 : i32
    return %c0_i32, %arg0 : i32, i32
  }
  func.func @transform_1(%arg0: i32) -> (i32, i32) {
    %c0_i32 = arith.constant 0 : i32
    %c0_i32_0 = arith.constant 0 : i32
    %c0_i32_1 = arith.constant 0 : i32
    return %c0_i32, %c0_i32_0 : i32, i32
  }
  func.func @transform_2(%arg0: i32) -> (i32, i32) {
    %c0_i32 = arith.constant 0 : i32
    %c0_i32_0 = arith.constant 0 : i32
    %c0_i32_1 = arith.constant 0 : i32
    return %c0_i32, %c0_i32_0 : i32, i32
  }
  func.func @transform_3(%arg0: i32) -> (i32, i32) {
    %c0_i32 = arith.constant 0 : i32
    %c0_i32_0 = arith.constant 0 : i32
    %c0_i32_1 = arith.constant 0 : i32
    return %c0_i32, %c0_i32_0 : i32, i32
  }
  func.func @transform_4(%arg0: i32) -> (i32, i32) {
    %c0_i32 = arith.constant 0 : i32
    %c0_i32_0 = arith.constant 0 : i32
    %c0_i32_1 = arith.constant 0 : i32
    return %c0_i32, %c0_i32_0 : i32, i32
  }
  func.func @transform_5(%arg0: i32) -> (i32, i32) {
    %c0_i32 = arith.constant 0 : i32
    %c0_i32_0 = arith.constant 0 : i32
    %c0_i32_1 = arith.constant 0 : i32
    return %c0_i32, %c0_i32_0 : i32, i32
  }
  func.func @transform_6(%arg0: i32) -> (i32, i32) {
    %c0_i32 = arith.constant 0 : i32
    %c0_i32_0 = arith.constant 0 : i32
    %c0_i32_1 = arith.constant 0 : i32
    return %c0_i32, %c0_i32_0 : i32, i32
  }
  func.func @transform_7(%arg0: i32) -> (i32, i32) {
    %c0_i32 = arith.constant 0 : i32
    %c0_i32_0 = arith.constant 0 : i32
    %c0_i32_1 = arith.constant 0 : i32
    return %c0_i32, %c0_i32_0 : i32, i32
  }
  func.func @transform_8(%arg0: i32) -> (i32, i32) {
    %c0_i32 = arith.constant 0 : i32
    %c0_i32_0 = arith.constant 0 : i32
    %c0_i32_1 = arith.constant 0 : i32
    return %c0_i32, %c0_i32_0 : i32, i32
  }
  func.func @transform_9(%arg0: i32) -> (i32, i32) {
    %c0_i32 = arith.constant 0 : i32
    %c0_i32_0 = arith.constant 0 : i32
    %c0_i32_1 = arith.constant 0 : i32
    return %c0_i32, %c0_i32_0 : i32, i32
  }
  func.func @transform_10(%arg0: i32) -> (i32, i32) {
    %c0_i32 = arith.constant 0 : i32
    %c0_i32_0 = arith.constant 0 : i32
    %c0_i32_1 = arith.constant 0 : i32
    return %c0_i32, %c0_i32_0 : i32, i32
  }
  func.func @transform_11(%arg0: i32) -> (i32, i32) {
    %c0_i32 = arith.constant 0 : i32
    %c0_i32_0 = arith.constant 0 : i32
    %c0_i32_1 = arith.constant 0 : i32
    return %c0_i32, %c0_i32_0 : i32, i32
  }
  func.func @transform_12(%arg0: i32) -> (i32, i32) {
    %c0_i32 = arith.constant 0 : i32
    %c0_i32_0 = arith.constant 0 : i32
    %c0_i32_1 = arith.constant 0 : i32
    return %c0_i32, %c0_i32_0 : i32, i32
  }
  func.func @transform_13(%arg0: i32) -> (i32, i32) {
    %c0_i32 = arith.constant 0 : i32
    %c0_i32_0 = arith.constant 0 : i32
    return %c0_i32, %arg0 : i32, i32
  }
}

</mosaic_0001>

<llo_original>
// kernel: deep_autoencoder_forward.1
$region0: #{deep_autoencoder_forward.1}
  #allocation0 [shape = 'u32[]', space=smem, size = 0x4, offset = 0x4, fixed_abs, tag = 'smem constant byte address 0x4 - core index']
  #allocation1 [shape = 'u32[72,128]{1,0:T(1,128)}', space=vmem, size = 0x9000, scoped, tag = 'internal scratch']
  %s0 = inlined_call_operand.vmem [shape: bf16[32,128], index: 0, kind: input, shape index: {}]
  %s1 = inlined_call_operand.vmem [shape: bf16[64,32], index: 1, kind: input, shape index: {}]
  %s2 = inlined_call_operand.vmem [shape: f32[64,1], index: 2, kind: input, shape index: {}]
  %s3 = inlined_call_operand.vmem [shape: bf16[32,64], index: 3, kind: input, shape index: {}]
  %s4 = inlined_call_operand.vmem [shape: f32[32,1], index: 4, kind: input, shape index: {}]
  %s5 = inlined_call_operand.vmem [shape: bf16[16,32], index: 5, kind: input, shape index: {}]
  %s6 = inlined_call_operand.vmem [shape: f32[16,1], index: 6, kind: input, shape index: {}]
  %s7 = inlined_call_operand.vmem [shape: bf16[32,16], index: 7, kind: input, shape index: {}]
  %s8 = inlined_call_operand.vmem [shape: f32[32,1], index: 8, kind: input, shape index: {}]
  %s9 = inlined_call_operand.vmem [shape: bf16[64,32], index: 9, kind: input, shape index: {}]
  %s10 = inlined_call_operand.vmem [shape: f32[64,1], index: 10, kind: input, shape index: {}]
  %s11 = inlined_call_operand.vmem [shape: bf16[32,64], index: 11, kind: input, shape index: {}]
  %s12 = inlined_call_operand.vmem [shape: f32[32,1], index: 12, kind: input, shape index: {}]
  %s13 = inlined_call_operand.vmem [shape: bf16[32,128], index: 13, kind: output, shape index: {}]
  %s14 = sld [smem:[#allocation0]]
  $region62: #{deep_autoencoder_forward.1} parent=0
    _
  %s16 = ssub.s32 1, %s14
  %s17 = scalar_select 0, %s16, %s14
  // Predicated region
  $region2: #{deep_autoencoder_forward.1} parent=0 // pred_check
    _
  $region3: #{deep_autoencoder_forward.1} parent=0 // pred_check_branch
    %19 = sbr.rel (0) target = $region5
  $region4: #{deep_autoencoder_forward.1} parent=0 // pred_region
    _
  $region5: #{deep_autoencoder_forward.1} parent=0 // pred_fallthru
    _
  // Predicated region
  $region6: #{deep_autoencoder_forward.1} parent=0 // pred_check
    _
  $region7: #{deep_autoencoder_forward.1} parent=0 // pred_check_branch
    %21 = sbr.rel (0) target = $region9
  $region8: #{deep_autoencoder_forward.1} parent=0 // pred_region
    _
  $region9: #{deep_autoencoder_forward.1} parent=0 // pred_fallthru
    _
  // Predicated region
  $region10: #{deep_autoencoder_forward.1} parent=0 // pred_check
    _
  $region11: #{deep_autoencoder_forward.1} parent=0 // pred_check_branch
    %23 = sbr.rel (0) target = $region13
  $region12: #{deep_autoencoder_forward.1} parent=0 // pred_region
    _
  $region13: #{deep_autoencoder_forward.1} parent=0 // pred_fallthru
    _
  // Predicated region
  $region14: #{deep_autoencoder_forward.1} parent=0 // pred_check
    _
  $region15: #{deep_autoencoder_forward.1} parent=0 // pred_check_branch
    %25 = sbr.rel (0) target = $region17
  $region16: #{deep_autoencoder_forward.1} parent=0 // pred_region
    _
  $region17: #{deep_autoencoder_forward.1} parent=0 // pred_fallthru
    _
  // Predicated region
  $region18: #{deep_autoencoder_forward.1} parent=0 // pred_check
    _
  $region19: #{deep_autoencoder_forward.1} parent=0 // pred_check_branch
    %27 = sbr.rel (0) target = $region21
  $region20: #{deep_autoencoder_forward.1} parent=0 // pred_region
    _
  $region21: #{deep_autoencoder_forward.1} parent=0 // pred_fallthru
    _
  // Predicated region
  $region22: #{deep_autoencoder_forward.1} parent=0 // pred_check
    _
  $region23: #{deep_autoencoder_forward.1} parent=0 // pred_check_branch
    %29 = sbr.rel (0) target = $region25
  $region24: #{deep_autoencoder_forward.1} parent=0 // pred_region
    _
  $region25: #{deep_autoencoder_forward.1} parent=0 // pred_fallthru
    _
  // Predicated region
  $region26: #{deep_autoencoder_forward.1} parent=0 // pred_check
    _
  $region27: #{deep_autoencoder_forward.1} parent=0 // pred_check_branch
    %31 = sbr.rel (0) target = $region29
  $region28: #{deep_autoencoder_forward.1} parent=0 // pred_region
    _
  $region29: #{deep_autoencoder_forward.1} parent=0 // pred_fallthru
    _
  // Predicated region
  $region30: #{deep_autoencoder_forward.1} parent=0 // pred_check
    _
  $region31: #{deep_autoencoder_forward.1} parent=0 // pred_check_branch
    %33 = sbr.rel (0) target = $region33
  $region32: #{deep_autoencoder_forward.1} parent=0 // pred_region
    _
  $region33: #{deep_autoencoder_forward.1} parent=0 // pred_fallthru
    _
  // Predicated region
  $region34: #{deep_autoencoder_forward.1} parent=0 // pred_check
    _
  $region35: #{deep_autoencoder_forward.1} parent=0 // pred_check_branch
    %35 = sbr.rel (0) target = $region37
  $region36: #{deep_autoencoder_forward.1} parent=0 // pred_region
    _
  $region37: #{deep_autoencoder_forward.1} parent=0 // pred_fallthru
    _
  // Predicated region
  $region38: #{deep_autoencoder_forward.1} parent=0 // pred_check
    _
  $region39: #{deep_autoencoder_forward.1} parent=0 // pred_check_branch
    %37 = sbr.rel (0) target = $region41
  $region40: #{deep_autoencoder_forward.1} parent=0 // pred_region
    _
  $region41: #{deep_autoencoder_forward.1} parent=0 // pred_fallthru
    _
  // Predicated region
  $region42: #{deep_autoencoder_forward.1} parent=0 // pred_check
    _
  $region43: #{deep_autoencoder_forward.1} parent=0 // pred_check_branch
    %39 = sbr.rel (0) target = $region45
  $region44: #{deep_autoencoder_forward.1} parent=0 // pred_region
    _
  $region45: #{deep_autoencoder_forward.1} parent=0 // pred_fallthru
    _
  // Predicated region
  $region46: #{deep_autoencoder_forward.1} parent=0 // pred_check
    _
  $region47: #{deep_autoencoder_forward.1} parent=0 // pred_check_branch
    %41 = sbr.rel (0) target = $region49
  $region48: #{deep_autoencoder_forward.1} parent=0 // pred_region
    _
  $region49: #{deep_autoencoder_forward.1} parent=0 // pred_fallthru
    _
  // Predicated region
  $region50: #{deep_autoencoder_forward.1} parent=0 // pred_check
    _
  $region51: #{deep_autoencoder_forward.1} parent=0 // pred_check_branch
    %43 = sbr.rel (0) target = $region53
  $region52: #{deep_autoencoder_forward.1} parent=0 // pred_region
    _
  $region53: #{deep_autoencoder_forward.1} parent=0 // pred_fallthru
    _
  %v45 = vld [vmem:[%s0] sm:$0xf]
  %v46 = vld [vmem:[%s0 + $0x4] sm:$0xf]
  %v47 = vld [vmem:[%s0 + $0x8] sm:$0xf]
  %v48 = vld [vmem:[%s0 + $0xc] sm:$0xf]
  %v49 = vld [vmem:[%s1] sm:$0xf]
  %v50 = vld [vmem:[%s1 + $0x4] sm:$0xf]
  %v51 = vld [vmem:[%s1 + $0x8] sm:$0xf]
  %v52 = vld [vmem:[%s1 + $0xc] sm:$0xf]
  %v53 = vld [vmem:[%s1 + $0x10] sm:$0xf]
  %v54 = vld [vmem:[%s1 + $0x14] sm:$0xf]
  %v55 = vld [vmem:[%s1 + $0x18] sm:$0xf]
  %v56 = vld [vmem:[%s1 + $0x1c] sm:$0xf]
  %v57 = vld [vmem:[%s2] sm:$0xff]
  %v58 = vld [vmem:[%s2 + $0x8] sm:$0xff]
  %v59 = vld [vmem:[%s2 + $0x10] sm:$0xff]
  %v60 = vld [vmem:[%s2 + $0x18] sm:$0xff]
  %v61 = vld [vmem:[%s2 + $0x20] sm:$0xff]
  %v62 = vld [vmem:[%s2 + $0x28] sm:$0xff]
  %v63 = vld [vmem:[%s2 + $0x30] sm:$0xff]
  %v64 = vld [vmem:[%s2 + $0x38] sm:$0xff]
  %66 = vset.pattern.permute.xlu0 0
  %67 = vperm.xlu0 %66, %v57
  %v68 = vpop.permute.xlu0 %67
  %71 = vset.pattern.permute.xlu0 0
  %72 = vperm.xlu0 %71, %v58
  %v73 = vpop.permute.xlu0 %72
  %76 = vset.pattern.permute.xlu0 0
  %77 = vperm.xlu0 %76, %v59
  %v78 = vpop.permute.xlu0 %77
  %81 = vset.pattern.permute.xlu0 0
  %82 = vperm.xlu0 %81, %v60
  %v83 = vpop.permute.xlu0 %82
  %86 = vset.pattern.permute.xlu0 0
  %87 = vperm.xlu0 %86, %v61
  %v88 = vpop.permute.xlu0 %87
  %91 = vset.pattern.permute.xlu0 0
  %92 = vperm.xlu0 %91, %v62
  %v93 = vpop.permute.xlu0 %92
  %96 = vset.pattern.permute.xlu0 0
  %97 = vperm.xlu0 %96, %v63
  %v98 = vpop.permute.xlu0 %97
  %101 = vset.pattern.permute.xlu0 0
  %102 = vperm.xlu0 %101, %v64
  %v103 = vpop.permute.xlu0 %102
  %v113 = vunpack.c.l.b16 %v49
  %v114 = vunpack.c.l.b16 %v50
  %v115 = vunpack.c.l.b16 %v51
  %v116 = vunpack.c.l.b16 %v52
  %v117 = vunpack.c.l.b16 %v53
  %v118 = vunpack.c.l.b16 %v54
  %v119 = vunpack.c.l.b16 %v55
  %v120 = vunpack.c.l.b16 %v56
  %v121 = vpack.c.b16 %v114, %v113
  %v122 = vpack.c.b16 %v116, %v115
  %v123 = vpack.c.b16 %v118, %v117
  %v124 = vpack.c.b16 %v120, %v119
  %v129 = vunpack.c.l.b16 %v45
  %v130 = vunpack.c.l.b16 %v46
  %v131 = vunpack.c.l.b16 %v47
  %v132 = vunpack.c.l.b16 %v48
  %v133 = vpack.c.b16 %v130, %v129
  %v134 = vpack.c.b16 %v132, %v131
  %vm137 = vcmask 261120
  %v139 = vsel %vm137, %v121, 0
  %v142 = vsel %vm137, %v122, 0
  %v145 = vsel %vm137, %v123, 0
  %v148 = vsel %vm137, %v124, 0
  %150 = vmatpush.bf16.msra.mxu0 0
  %151 = vmatpush.bf16.msra.mxu0 0
  %152 = vmatpush.bf16.msra.mxu0 0
  %153 = vmatpush.bf16.msra.mxu0 0
  %154 = vmatpush.bf16.msra.mxu0 0
  %155 = vmatpush.bf16.msra.mxu0 0
  %156 = vmatpush.bf16.msra.mxu0 %v134
  %157 = vmatpush.bf16.msra.mxu0 %v133
  %158 = vmatmul.bf16.gmra.mxu0 %v139
  %v159 = vpop.f32.mrf.mxu0
  %v160 = vadd.f32 %v68, %v159
  %v161 = vpop.f32.mrf.mxu0
  %v162 = vadd.f32 %v73, %v161
  %163 = vmatmul.bf16.gmra.mxu0 %v142
  %v164 = vpop.f32.mrf.mxu0
  %v165 = vadd.f32 %v78, %v164
  %v166 = vpop.f32.mrf.mxu0
  %v167 = vadd.f32 %v83, %v166
  %168 = vmatmul.bf16.gmra.mxu0 %v145
  %v169 = vpop.f32.mrf.mxu0
  %v170 = vadd.f32 %v88, %v169
  %v171 = vpop.f32.mrf.mxu0
  %v172 = vadd.f32 %v93, %v171
  %173 = vmatmul.bf16.gmra.mxu0 %v148
  %v174 = vpop.f32.mrf.mxu0
  %v175 = vadd.f32 %v98, %v174
  %v176 = vpop.f32.mrf.mxu0
  %v177 = vadd.f32 %v103, %v176
  %178 = vdwg.mxu0
  %v179 = vmax.f32 %v160, 0.0
  %v180 = vmax.f32 %v162, 0.0
  %v181 = vmax.f32 %v165, 0.0
  %v182 = vmax.f32 %v167, 0.0
  %v183 = vmax.f32 %v170, 0.0
  %v184 = vmax.f32 %v172, 0.0
  %v185 = vmax.f32 %v175, 0.0
  %v186 = vmax.f32 %v177, 0.0
  %v187 = vpack.c.bf16 %v180, %v179
  %v188 = vpack.c.bf16 %v182, %v181
  %v189 = vpack.c.bf16 %v184, %v183
  %v190 = vpack.c.bf16 %v186, %v185
  %v191 = vld [vmem:[%s3] sm:$0xf]
  %v192 = vld [vmem:[%s3 + $0x4] sm:$0xf]
  %v193 = vld [vmem:[%s3 + $0x8] sm:$0xf]
  %v194 = vld [vmem:[%s3 + $0xc] sm:$0xf]
  %v195 = vld [vmem:[%s4] sm:$0xff]
  %v196 = vld [vmem:[%s4 + $0x8] sm:$0xff]
  %v197 = vld [vmem:[%s4 + $0x10] sm:$0xff]
  %v198 = vld [vmem:[%s4 + $0x18] sm:$0xff]
  %200 = vset.pattern.permute.xlu0 0
  %201 = vperm.xlu0 %200, %v195
  %v202 = vpop.permute.xlu0 %201
  %205 = vset.pattern.permute.xlu0 0
  %206 = vperm.xlu0 %205, %v196
  %v207 = vpop.permute.xlu0 %206
  %210 = vset.pattern.permute.xlu0 0
  %211 = vperm.xlu0 %210, %v197
  %v212 = vpop.permute.xlu0 %211
  %215 = vset.pattern.permute.xlu0 0
  %216 = vperm.xlu0 %215, %v198
  %v217 = vpop.permute.xlu0 %216
  %v223 = vunpack.c.l.b16 %v191
  %v224 = vunpack.c.l.b16 %v192
  %v225 = vunpack.c.l.b16 %v193
  %v226 = vunpack.c.l.b16 %v194
  %v227 = vpack.c.b16 %v224, %v223
  %v228 = vpack.c.b16 %v226, %v225
  %vm229 = vcmask 523264
  %v231 = vsel %vm229, %v227, 0
  %v234 = vsel %vm229, %v228, 0
  %236 = vmatpush.bf16.msra.mxu0 0
  %237 = vmatpush.bf16.msra.mxu0 0
  %238 = vmatpush.bf16.msra.mxu0 0
  %239 = vmatpush.bf16.msra.mxu0 0
  %240 = vmatpush.bf16.msra.mxu0 %v190
  %241 = vmatpush.bf16.msra.mxu0 %v189
  %242 = vmatpush.bf16.msra.mxu0 %v188
  %243 = vmatpush.bf16.msra.mxu0 %v187
  %244 = vmatmul.bf16.gmra.mxu0 %v231
  %v245 = vpop.f32.mrf.mxu0
  %v246 = vadd.f32 %v202, %v245
  %v247 = vpop.f32.mrf.mxu0
  %v248 = vadd.f32 %v207, %v247
  %249 = vmatmul.bf16.gmra.mxu0 %v234
  %v250 = vpop.f32.mrf.mxu0
  %v251 = vadd.f32 %v212, %v250
  %v252 = vpop.f32.mrf.mxu0
  %v253 = vadd.f32 %v217, %v252
  %254 = vdwg.mxu0
  %v255 = vmax.f32 %v246, 0.0
  %v256 = vmax.f32 %v248, 0.0
  %v257 = vmax.f32 %v251, 0.0
  %v258 = vmax.f32 %v253, 0.0
  %v259 = vpack.c.bf16 %v256, %v255
  %v260 = vpack.c.bf16 %v258, %v257
  %v261 = vld [vmem:[%s5] sm:$0xf]
  %v262 = vld [vmem:[%s5 + $0x4] sm:$0xf]
  %v263 = vld [vmem:[%s6] sm:$0xff]
  %v264 = vld [vmem:[%s6 + $0x8] sm:$0xff]
  %266 = vset.pattern.permute.xlu0 0
  %267 = vperm.xlu0 %266, %v263
  %v268 = vpop.permute.xlu0 %267
  %271 = vset.pattern.permute.xlu0 0
  %272 = vperm.xlu0 %271, %v264
  %v273 = vpop.permute.xlu0 %272
  %v277 = vunpack.c.l.b16 %v261
  %v278 = vunpack.c.l.b16 %v262
  %v279 = vpack.c.b16 %v278, %v277
  %v281 = vsel %vm137, %v279, 0
  %283 = vmatpush.bf16.msra.mxu0 0
  %284 = vmatpush.bf16.msra.mxu0 0
  %285 = vmatpush.bf16.msra.mxu0 0
  %286 = vmatpush.bf16.msra.mxu0 0
  %287 = vmatpush.bf16.msra.mxu0 0
  %288 = vmatpush.bf16.msra.mxu0 0
  %289 = vmatpush.bf16.msra.mxu0 %v260
  %290 = vmatpush.bf16.msra.mxu0 %v259
  %291 = vmatmul.bf16.gmra.mxu0 %v281
  %v292 = vpop.f32.mrf.mxu0
  %v293 = vadd.f32 %v268, %v292
  %v294 = vpop.f32.mrf.mxu0
  %v295 = vadd.f32 %v273, %v294
  %296 = vdwg.mxu0
  %v297 = vmax.f32 %v293, 0.0
  %v298 = vmax.f32 %v295, 0.0
  %v299 = vpack.c.bf16 %v298, %v297
  %v300 = vld [vmem:[%s7] sm:$0xf]
  %v301 = vld [vmem:[%s7 + $0x4] sm:$0xf]
  %v302 = vld [vmem:[%s7 + $0x8] sm:$0xf]
  %v303 = vld [vmem:[%s7 + $0xc] sm:$0xf]
  %v304 = vld [vmem:[%s8] sm:$0xff]
  %v305 = vld [vmem:[%s8 + $0x8] sm:$0xff]
  %v306 = vld [vmem:[%s8 + $0x10] sm:$0xff]
  %v307 = vld [vmem:[%s8 + $0x18] sm:$0xff]
  %309 = vset.pattern.permute.xlu0 0
  %310 = vperm.xlu0 %309, %v304
  %v311 = vpop.permute.xlu0 %310
  %314 = vset.pattern.permute.xlu0 0
  %315 = vperm.xlu0 %314, %v305
  %v316 = vpop.permute.xlu0 %315
  %319 = vset.pattern.permute.xlu0 0
  %320 = vperm.xlu0 %319, %v306
  %v321 = vpop.permute.xlu0 %320
  %324 = vset.pattern.permute.xlu0 0
  %325 = vperm.xlu0 %324, %v307
  %v326 = vpop.permute.xlu0 %325
  %v332 = vunpack.c.l.b16 %v300
  %v333 = vunpack.c.l.b16 %v301
  %v334 = vunpack.c.l.b16 %v302
  %v335 = vunpack.c.l.b16 %v303
  %v336 = vpack.c.b16 %v333, %v332
  %v337 = vpack.c.b16 %v335, %v334
  %vm338 = vcmask 130048
  %v340 = vsel %vm338, %v336, 0
  %v343 = vsel %vm338, %v337, 0
  %345 = vmatpush.bf16.msra.mxu0 0
  %346 = vmatpush.bf16.msra.mxu0 0
  %347 = vmatpush.bf16.msra.mxu0 0
  %348 = vmatpush.bf16.msra.mxu0 0
  %349 = vmatpush.bf16.msra.mxu0 0
  %350 = vmatpush.bf16.msra.mxu0 0
  %351 = vmatpush.bf16.msra.mxu0 0
  %352 = vmatpush.bf16.msra.mxu0 %v299
  %353 = vmatmul.bf16.gmra.mxu0 %v340
  %v354 = vpop.f32.mrf.mxu0
  %v355 = vadd.f32 %v311, %v354
  %v356 = vpop.f32.mrf.mxu0
  %v357 = vadd.f32 %v316, %v356
  %358 = vmatmul.bf16.gmra.mxu0 %v343
  %v359 = vpop.f32.mrf.mxu0
  %v360 = vadd.f32 %v321, %v359
  %v361 = vpop.f32.mrf.mxu0
  %v362 = vadd.f32 %v326, %v361
  %363 = vdwg.mxu0
  %v364 = vmax.f32 %v355, 0.0
  %v365 = vmax.f32 %v357, 0.0
  %v366 = vmax.f32 %v360, 0.0
  %v367 = vmax.f32 %v362, 0.0
  %v368 = vpack.c.bf16 %v365, %v364
  %v369 = vpack.c.bf16 %v367, %v366
  %v370 = vld [vmem:[%s9] sm:$0xf]
  %v371 = vld [vmem:[%s9 + $0x4] sm:$0xf]
  %v372 = vld [vmem:[%s9 + $0x8] sm:$0xf]
  %v373 = vld [vmem:[%s9 + $0xc] sm:$0xf]
  %v374 = vld [vmem:[%s9 + $0x10] sm:$0xf]
  %v375 = vld [vmem:[%s9 + $0x14] sm:$0xf]
  %v376 = vld [vmem:[%s9 + $0x18] sm:$0xf]
  %v377 = vld [vmem:[%s9 + $0x1c] sm:$0xf]
  %v378 = vld [vmem:[%s10] sm:$0xff]
  %v379 = vld [vmem:[%s10 + $0x8] sm:$0xff]
  %v380 = vld [vmem:[%s10 + $0x10] sm:$0xff]
  %v381 = vld [vmem:[%s10 + $0x18] sm:$0xff]
  %v382 = vld [vmem:[%s10 + $0x20] sm:$0xff]
  %v383 = vld [vmem:[%s10 + $0x28] sm:$0xff]
  %v384 = vld [vmem:[%s10 + $0x30] sm:$0xff]
  %v385 = vld [vmem:[%s10 + $0x38] sm:$0xff]
  %387 = vset.pattern.permute.xlu0 0
  %388 = vperm.xlu0 %387, %v378
  %v389 = vpop.permute.xlu0 %388
  %392 = vset.pattern.permute.xlu0 0
  %393 = vperm.xlu0 %392, %v379
  %v394 = vpop.permute.xlu0 %393
  %397 = vset.pattern.permute.xlu0 0
  %398 = vperm.xlu0 %397, %v380
  %v399 = vpop.permute.xlu0 %398
  %402 = vset.pattern.permute.xlu0 0
  %403 = vperm.xlu0 %402, %v381
  %v404 = vpop.permute.xlu0 %403
  %407 = vset.pattern.permute.xlu0 0
  %408 = vperm.xlu0 %407, %v382
  %v409 = vpop.permute.xlu0 %408
  %412 = vset.pattern.permute.xlu0 0
  %413 = vperm.xlu0 %412, %v383
  %v414 = vpop.permute.xlu0 %413
  %417 = vset.pattern.permute.xlu0 0
  %418 = vperm.xlu0 %417, %v384
  %v419 = vpop.permute.xlu0 %418
  %422 = vset.pattern.permute.xlu0 0
  %423 = vperm.xlu0 %422, %v385
  %v424 = vpop.permute.xlu0 %423
  %v434 = vunpack.c.l.b16 %v370
  %v435 = vunpack.c.l.b16 %v371
  %v436 = vunpack.c.l.b16 %v372
  %v437 = vunpack.c.l.b16 %v373
  %v438 = vunpack.c.l.b16 %v374
  %v439 = vunpack.c.l.b16 %v375
  %v440 = vunpack.c.l.b16 %v376
  %v441 = vunpack.c.l.b16 %v377
  %v442 = vpack.c.b16 %v435, %v434
  %v443 = vpack.c.b16 %v437, %v436
  %v444 = vpack.c.b16 %v439, %v438
  %v445 = vpack.c.b16 %v441, %v440
  %v447 = vsel %vm137, %v442, 0
  %v450 = vsel %vm137, %v443, 0
  %v453 = vsel %vm137, %v444, 0
  %v456 = vsel %vm137, %v445, 0
  %458 = vmatpush.bf16.msra.mxu0 0
  %459 = vmatpush.bf16.msra.mxu0 0
  %460 = vmatpush.bf16.msra.mxu0 0
  %461 = vmatpush.bf16.msra.mxu0 0
  %462 = vmatpush.bf16.msra.mxu0 0
  %463 = vmatpush.bf16.msra.mxu0 0
  %464 = vmatpush.bf16.msra.mxu0 %v369
  %465 = vmatpush.bf16.msra.mxu0 %v368
  %466 = vmatmul.bf16.gmra.mxu0 %v447
  %v467 = vpop.f32.mrf.mxu0
  %v468 = vadd.f32 %v389, %v467
  %v469 = vpop.f32.mrf.mxu0
  %v470 = vadd.f32 %v394, %v469
  %471 = vmatmul.bf16.gmra.mxu0 %v450
  %v472 = vpop.f32.mrf.mxu0
  %v473 = vadd.f32 %v399, %v472
  %v474 = vpop.f32.mrf.mxu0
  %v475 = vadd.f32 %v404, %v474
  %476 = vmatmul.bf16.gmra.mxu0 %v453
  %v477 = vpop.f32.mrf.mxu0
  %v478 = vadd.f32 %v409, %v477
  %v479 = vpop.f32.mrf.mxu0
  %v480 = vadd.f32 %v414, %v479
  %481 = vmatmul.bf16.gmra.mxu0 %v456
  %v482 = vpop.f32.mrf.mxu0
  %v483 = vadd.f32 %v419, %v482
  %v484 = vpop.f32.mrf.mxu0
  %v485 = vadd.f32 %v424, %v484
  %486 = vdwg.mxu0
  %v487 = vmax.f32 %v468, 0.0
  %v488 = vmax.f32 %v470, 0.0
  %v489 = vmax.f32 %v473, 0.0
  %v490 = vmax.f32 %v475, 0.0
  %v491 = vmax.f32 %v478, 0.0
  %v492 = vmax.f32 %v480, 0.0
  %v493 = vmax.f32 %v483, 0.0
  %v494 = vmax.f32 %v485, 0.0
  %v495 = vpack.c.bf16 %v488, %v487
  %v496 = vpack.c.bf16 %v490, %v489
  %v497 = vpack.c.bf16 %v492, %v491
  %v498 = vpack.c.bf16 %v494, %v493
  %v499 = vld [vmem:[%s11] sm:$0xf]
  %v500 = vld [vmem:[%s11 + $0x4] sm:$0xf]
  %v501 = vld [vmem:[%s11 + $0x8] sm:$0xf]
  %v502 = vld [vmem:[%s11 + $0xc] sm:$0xf]
  %v503 = vld [vmem:[%s12] sm:$0xff]
  %v504 = vld [vmem:[%s12 + $0x8] sm:$0xff]
  %v505 = vld [vmem:[%s12 + $0x10] sm:$0xff]
  %v506 = vld [vmem:[%s12 + $0x18] sm:$0xff]
  %508 = vset.pattern.permute.xlu0 0
  %509 = vperm.xlu0 %508, %v503
  %v510 = vpop.permute.xlu0 %509
  %513 = vset.pattern.permute.xlu0 0
  %514 = vperm.xlu0 %513, %v504
  %v515 = vpop.permute.xlu0 %514
  %518 = vset.pattern.permute.xlu0 0
  %519 = vperm.xlu0 %518, %v505
  %v520 = vpop.permute.xlu0 %519
  %523 = vset.pattern.permute.xlu0 0
  %524 = vperm.xlu0 %523, %v506
  %v525 = vpop.permute.xlu0 %524
  %v531 = vunpack.c.l.b16 %v499
  %v532 = vunpack.c.l.b16 %v500
  %v533 = vunpack.c.l.b16 %v501
  %v534 = vunpack.c.l.b16 %v502
  %v535 = vpack.c.b16 %v532, %v531
  %v536 = vpack.c.b16 %v534, %v533
  %v538 = vsel %vm229, %v535, 0
  %v541 = vsel %vm229, %v536, 0
  %543 = vmatpush.bf16.msra.mxu0 0
  %544 = vmatpush.bf16.msra.mxu0 0
  %545 = vmatpush.bf16.msra.mxu0 0
  %546 = vmatpush.bf16.msra.mxu0 0
  %547 = vmatpush.bf16.msra.mxu0 %v498
  %548 = vmatpush.bf16.msra.mxu0 %v497
  %549 = vmatpush.bf16.msra.mxu0 %v496
  %550 = vmatpush.bf16.msra.mxu0 %v495
  %551 = vmatmul.bf16.gmra.mxu0 %v538
  %v552 = vpop.f32.mrf.mxu0
  %v553 = vadd.f32 %v510, %v552
  %v554 = vpop.f32.mrf.mxu0
  %v555 = vadd.f32 %v515, %v554
  %556 = vmatmul.bf16.gmra.mxu0 %v541
  %v557 = vpop.f32.mrf.mxu0
  %v558 = vadd.f32 %v520, %v557
  %v559 = vpop.f32.mrf.mxu0
  %v560 = vadd.f32 %v525, %v559
  %561 = vdwg.mxu0
  %v562 = vsub.f32 0.0, %v553
  %v563 = vsub.f32 0.0, %v555
  %v564 = vsub.f32 0.0, %v558
  %v565 = vsub.f32 0.0, %v560
  %v566 = vmul.f32 %v562, 1.442695
  %v567 = vpow.pop %v566
  %v568 = vmul.f32 %v563, 1.442695
  %v569 = vpow.pop %v568
  %v570 = vmul.f32 %v564, 1.442695
  %v571 = vpow.pop %v570
  %v572 = vmul.f32 %v565, 1.442695
  %v573 = vpow.pop %v572
  %v574 = vadd.f32 %v567, 1.0
  %v575 = vadd.f32 %v569, 1.0
  %v576 = vadd.f32 %v571, 1.0
  %v577 = vadd.f32 %v573, 1.0
  %v578 = vrcp.pop %v574
  %v579 = vrcp.pop %v575
  %v580 = vrcp.pop %v576
  %v581 = vrcp.pop %v577
  %v582 = vpack.c.bf16 %v578, %v578
  %v583 = vpack.c.bf16 %v579, %v579
  %v584 = vpack.c.bf16 %v580, %v580
  %v585 = vpack.c.bf16 %v581, %v581
  %586 = vst [vmem:[%s13] sm:$0xf] %v582
  %587 = vst [vmem:[%s13 + $0x4] sm:$0xf] %v583
  %588 = vst [vmem:[%s13 + $0x8] sm:$0xf] %v584
  %589 = vst [vmem:[%s13 + $0xc] sm:$0xf] %v585
  // Predicated region
  $region54: #{deep_autoencoder_forward.1} parent=0 // pred_check
    _
  $region55: #{deep_autoencoder_forward.1} parent=0 // pred_check_branch
    %591 = sbr.rel (0) target = $region57
  $region56: #{deep_autoencoder_forward.1} parent=0 // pred_region
    _
  $region57: #{deep_autoencoder_forward.1} parent=0 // pred_fallthru
    _
  // Predicated region
  $region58: #{deep_autoencoder_forward.1} parent=0 // pred_check
    _
  $region59: #{deep_autoencoder_forward.1} parent=0 // pred_check_branch
    %593 = sbr.rel (0) target = $region61
  $region60: #{deep_autoencoder_forward.1} parent=0 // pred_region
    _
  $region61: #{deep_autoencoder_forward.1} parent=0 // pred_fallthru
    _

</llo_original>
